<compile_context>
chip_gen: v5e
topology: v5e:2x2
jax: 0.10.0
libtpu: 0.0.40
codegen_flags: <defaults>
</compile_context>

<pallas_src>
import math
import jax
import jax.numpy as jnp
from jax.experimental import pallas as pl
from jax.experimental.pallas import tpu as pltpu


def linear_projection_kernel(x_ref, w_ref, b_ref, cls_ref, pos_ref, out_ref):
    # x_ref:   (1, N, P)   one batch element's patch vectors
    # w_ref:   (P, D)      projection weight (already laid out for x @ W)
    # b_ref:   (1, D)      projection bias
    # cls_ref: (1, D)      class token
    # pos_ref: (1, N+1, D) positional embedding
    # out_ref: (1, N+1, D) final output slab (lane-dense, written in final layout)
    x = x_ref[0]                                                    # (N, P)

    # Patch projection: one wide MXU matmul with f32 accumulation.
    proj = jnp.dot(x, w_ref[...], preferred_element_type=jnp.float32) + b_ref[...]  # (N, D)

    # Row 0: cls token + pos[0]  (the torch `cat` + broadcast add, fused here).
    out_ref[0, 0:1, :] = (cls_ref[...] + pos_ref[0, 0:1, :]).astype(out_ref.dtype)

    # Rows 1..N: projected patches + pos[1:].
    out_ref[0, 1:, :] = (proj + pos_ref[0, 1:, :]).astype(out_ref.dtype)


def linear_projection(x, params):
    """x: (B, num_patches, patch_vec_size). Returns (B, num_patches+1, latent_vec_dim)."""
    B, N, P = x.shape
    D = params["w"].shape[1]

    bias = params["b"].reshape(1, D)
    cls = params["cls_token"].reshape(1, D)
    pos = params["pos_embedding"].reshape(1, N + 1, D)

    return pl.pallas_call(
        linear_projection_kernel,
        out_shape=jax.ShapeDtypeStruct((B, N + 1, D), x.dtype),
        grid_spec=pltpu.PrefetchScalarGridSpec(
            num_scalar_prefetch=0,
            grid=(B,),
            in_specs=[
                pl.BlockSpec((1, N, P), lambda b: (b, 0, 0)),       # x (per-batch tile)
                pl.BlockSpec((P, D), lambda b: (0, 0)),             # W   (resident)
                pl.BlockSpec((1, D), lambda b: (0, 0)),             # b   (resident)
                pl.BlockSpec((1, D), lambda b: (0, 0)),             # cls (resident)
                pl.BlockSpec((1, N + 1, D), lambda b: (0, 0, 0)),   # pos (resident)
            ],
            out_specs=pl.BlockSpec((1, N + 1, D), lambda b: (b, 0, 0)),
        ),
        compiler_params=pltpu.CompilerParams(
            dimension_semantics=("parallel",)),
    )(x, params["w"], bias, cls, pos)


def _reference(x, params):
    B = x.shape[0]
    D = params["w"].shape[1]
    proj = x @ params["w"] + params["b"]                            # (B, N, D)
    cls = jnp.broadcast_to(params["cls_token"].reshape(1, 1, D), (B, 1, D))
    out = jnp.concatenate([cls, proj], axis=1) + params["pos_embedding"]
    return out


if __name__ == "__main__":
    # Small shapes consistent with the module: batch=2, 8 patches,
    # patch_vec_size=48 (e.g. 3-channel 4x4 patches), latent_vec_dim=32.
    B, num_patches, patch_vec_size, latent_vec_dim = 2, 8, 48, 32

    key = jax.random.PRNGKey(0)
    kx, kw, kb, kc, kp = jax.random.split(key, 5)

    x = jax.random.normal(kx, (B, num_patches, patch_vec_size), dtype=jnp.float32)
    s = 1.0 / math.sqrt(patch_vec_size)
    params = {
        # weight stored as (in, out), i.e. already transposed for x @ W
        "w": jax.random.uniform(kw, (patch_vec_size, latent_vec_dim), jnp.float32, -s, s),
        "b": jax.random.uniform(kb, (latent_vec_dim,), jnp.float32, -s, s),
        "cls_token": jax.random.normal(kc, (1, latent_vec_dim), dtype=jnp.float32),
        "pos_embedding": jax.random.normal(
            kp, (1, num_patches + 1, latent_vec_dim), dtype=jnp.float32),
    }

    out = linear_projection(x, params)
    out = jax.block_until_ready(out)

    ref = _reference(x, params)
    assert out.shape == (B, num_patches + 1, latent_vec_dim)
    assert jnp.allclose(out, ref, atol=1e-5, rtol=1e-5)

    print("KERNEL_OK")
</pallas_src>

<mosaic_0001>
module attributes {stable_mosaic.version = 11 : i64} {
  func.func @linear_projection_kernel(%arg0: i32, %arg1: memref<1x8x48xf32, #tpu.memory_space<vmem>>, %arg2: memref<48x32xf32, #tpu.memory_space<vmem>>, %arg3: memref<1x32xf32, #tpu.memory_space<vmem>>, %arg4: memref<1x32xf32, #tpu.memory_space<vmem>>, %arg5: memref<1x9x32xf32, #tpu.memory_space<vmem>>, %arg6: memref<1x9x32xf32, #tpu.memory_space<vmem>>) attributes {dimension_semantics = [#tpu.dimension_semantics<parallel>], iteration_bounds = array<i64: 2>, scalar_prefetch = 0 : i64, scratch_operands = 0 : i64, tpu.core_type = #tpu.core_type<tc>, window_params = [{transform_indices = @transform_0, window_bounds = array<i64: 1, 8, 48>}, {pipeline_mode = #tpu.pipeline_mode<synchronous>, transform_indices = @transform_1, window_bounds = array<i64: 48, 32>}, {pipeline_mode = #tpu.pipeline_mode<synchronous>, transform_indices = @transform_2, window_bounds = array<i64: 1, 32>}, {pipeline_mode = #tpu.pipeline_mode<synchronous>, transform_indices = @transform_3, window_bounds = array<i64: 1, 32>}, {pipeline_mode = #tpu.pipeline_mode<synchronous>, transform_indices = @transform_4, window_bounds = array<i64: 1, 9, 32>}, {transform_indices = @transform_5, window_bounds = array<i64: 1, 9, 32>}]} {
    %c0 = arith.constant 0 : index
    %c0_0 = arith.constant 0 : index
    %c0_1 = arith.constant 0 : index
    %0 = vector.load %arg1[%c0, %c0_0, %c0_1] : memref<1x8x48xf32, #tpu.memory_space<vmem>>, vector<1x8x48xf32>
    %1 = vector.shape_cast %0 : vector<1x8x48xf32> to vector<8x48xf32>
    %c0_2 = arith.constant 0 : index
    %c0_3 = arith.constant 0 : index
    %2 = vector.load %arg2[%c0_2, %c0_3] : memref<48x32xf32, #tpu.memory_space<vmem>>, vector<48x32xf32>
    %cst = arith.constant dense<0.000000e+00> : vector<8x32xf32>
    %3 = tpu.matmul %1, %2, %cst {dimension_numbers = #tpu.dot_dimension_numbers<[1], [0], [0], [1], [0, 0, 1, 1], [], []>} : vector<8x48xf32>, vector<48x32xf32>, vector<8x32xf32> -> vector<8x32xf32>
    %c0_4 = arith.constant 0 : index
    %c0_5 = arith.constant 0 : index
    %4 = vector.load %arg3[%c0_4, %c0_5] : memref<1x32xf32, #tpu.memory_space<vmem>>, vector<1x32xf32>
    %5 = vector.broadcast %4 : vector<1x32xf32> to vector<8x32xf32>
    %6 = arith.addf %3, %5 : vector<8x32xf32>
    %c0_6 = arith.constant 0 : index
    %c0_7 = arith.constant 0 : index
    %7 = vector.load %arg4[%c0_6, %c0_7] : memref<1x32xf32, #tpu.memory_space<vmem>>, vector<1x32xf32>
    %c0_8 = arith.constant 0 : index
    %c0_9 = arith.constant 0 : index
    %c0_10 = arith.constant 0 : index
    %8 = vector.load %arg5[%c0_8, %c0_9, %c0_10] : memref<1x9x32xf32, #tpu.memory_space<vmem>>, vector<1x1x32xf32>
    %9 = vector.shape_cast %8 : vector<1x1x32xf32> to vector<1x32xf32>
    %10 = arith.addf %7, %9 : vector<1x32xf32>
    %c0_11 = arith.constant 0 : index
    %c0_12 = arith.constant 0 : index
    %c0_13 = arith.constant 0 : index
    %11 = vector.load %arg6[%c0_11, %c0_12, %c0_13] : memref<1x9x32xf32, #tpu.memory_space<vmem>>, vector<1x1x32xf32>
    %12 = vector.shape_cast %11 : vector<1x1x32xf32> to vector<1x32xf32>
    %13 = vector.shape_cast %10 : vector<1x32xf32> to vector<1x1x32xf32>
    tpu.vector_store %arg6[%c0_11, %c0_12, %c0_13], %13 {strides = array<i32>} : memref<1x9x32xf32, #tpu.memory_space<vmem>>, vector<1x1x32xf32>,
    %c0_14 = arith.constant 0 : index
    %c1 = arith.constant 1 : index
    %c0_15 = arith.constant 0 : index
    %14 = vector.load %arg5[%c0_14, %c1, %c0_15] : memref<1x9x32xf32, #tpu.memory_space<vmem>>, vector<1x8x32xf32>
    %15 = vector.shape_cast %14 : vector<1x8x32xf32> to vector<8x32xf32>
    %16 = arith.addf %6, %15 : vector<8x32xf32>
    %c0_16 = arith.constant 0 : index
    %c1_17 = arith.constant 1 : index
    %c0_18 = arith.constant 0 : index
    %17 = vector.load %arg6[%c0_16, %c1_17, %c0_18] : memref<1x9x32xf32, #tpu.memory_space<vmem>>, vector<1x8x32xf32>
    %18 = vector.shape_cast %17 : vector<1x8x32xf32> to vector<8x32xf32>
    %19 = vector.shape_cast %16 : vector<8x32xf32> to vector<1x8x32xf32>
    tpu.vector_store %arg6[%c0_16, %c1_17, %c0_18], %19 {strides = array<i32>} : memref<1x9x32xf32, #tpu.memory_space<vmem>>, vector<1x8x32xf32>,
    return
  }
  func.func @transform_0(%arg0: i32) -> (i32, i32, i32) {
    %c0_i32 = arith.constant 0 : i32
    %c0_i32_0 = arith.constant 0 : i32
    %c0_i32_1 = arith.constant 0 : i32
    return %arg0, %c0_i32, %c0_i32_0 : i32, i32, i32
  }
  func.func @transform_1(%arg0: i32) -> (i32, i32) {
    %c0_i32 = arith.constant 0 : i32
    %c0_i32_0 = arith.constant 0 : i32
    %c0_i32_1 = arith.constant 0 : i32
    return %c0_i32, %c0_i32_0 : i32, i32
  }
  func.func @transform_2(%arg0: i32) -> (i32, i32) {
    %c0_i32 = arith.constant 0 : i32
    %c0_i32_0 = arith.constant 0 : i32
    %c0_i32_1 = arith.constant 0 : i32
    return %c0_i32, %c0_i32_0 : i32, i32
  }
  func.func @transform_3(%arg0: i32) -> (i32, i32) {
    %c0_i32 = arith.constant 0 : i32
    %c0_i32_0 = arith.constant 0 : i32
    %c0_i32_1 = arith.constant 0 : i32
    return %c0_i32, %c0_i32_0 : i32, i32
  }
  func.func @transform_4(%arg0: i32) -> (i32, i32, i32) {
    %c0_i32 = arith.constant 0 : i32
    %c0_i32_0 = arith.constant 0 : i32
    %c0_i32_1 = arith.constant 0 : i32
    %c0_i32_2 = arith.constant 0 : i32
    return %c0_i32, %c0_i32_0, %c0_i32_1 : i32, i32, i32
  }
  func.func @transform_5(%arg0: i32) -> (i32, i32, i32) {
    %c0_i32 = arith.constant 0 : i32
    %c0_i32_0 = arith.constant 0 : i32
    %c0_i32_1 = arith.constant 0 : i32
    return %arg0, %c0_i32, %c0_i32_0 : i32, i32, i32
  }
}

</mosaic_0001>

<llo_original>
// kernel: tpu_custom_call.1
$region0: #{tpu_custom_call.1}
  #allocation0 [shape = 'u32[]', space=smem, size = 0x4, offset = 0x4, fixed_abs, tag = 'smem constant byte address 0x4 - core index']
  #allocation1 [shape = 'u32[72,128]{1,0:T(1,128)}', space=vmem, size = 0x9000, scoped, tag = 'internal scratch']
  %s0 = inlined_call_operand.vmem [shape: f32[2,8,48], index: 0, kind: input, shape index: {}]
  %s1 = inlined_call_operand.vmem [shape: f32[48,32], index: 1, kind: input, shape index: {}]
  %s2 = inlined_call_operand.vmem [shape: f32[1,32], index: 2, kind: input, shape index: {}]
  %s3 = inlined_call_operand.vmem [shape: f32[1,32], index: 3, kind: input, shape index: {}]
  %s4 = inlined_call_operand.vmem [shape: f32[1,9,32], index: 4, kind: input, shape index: {}]
  %s5 = inlined_call_operand.vmem [shape: f32[2,9,32], index: 5, kind: output, shape index: {}]
  %s6 = sld [smem:[#allocation0]]
  $region53: #{tpu_custom_call.1} parent=0
    _
  %s8 = ssub.s32 1, %s6
  %s9 = scalar_select 0, %s8, %s6
  loop: start=0, step=1, limit=4
  $region2: #{tpu_custom_call.1} parent=0 // loop_pre_header
    _
  $region3: #{tpu_custom_call.1} parent=0 // loop_header
    %s11 = sphi 0, %s15
    %p12 = scmp.ge.s32.totalorder %s11, 4
    %s21 = sphi 0, %s23
    %s24 = sphi 0, %s21
    %s25 = sphi 0, %s24
    %s41 = sphi 0, %s25
    %s45 = sphi 0, %s45
    %s47 = sphi 0, %s45
    %s48 = sphi 0, %s47
    %s62 = sphi 0, %s48
    %s66 = sphi 0, %s66
    %s68 = sphi 0, %s66
    %s69 = sphi 0, %s68
    %s83 = sphi 0, %s69
    %s87 = sphi 0, %s87
    %s89 = sphi 0, %s87
    %s90 = sphi 0, %s89
    %s104 = sphi 0, %s90
    %s108 = sphi 0, %s108
    %s110 = sphi 0, %s108
    %s111 = sphi 0, %s110
    %s125 = sphi 0, %s111
    %s131 = sphi 0, %s133
    %s134 = sphi 0, %s131
    %s135 = sphi 0, %s134
    %s151 = sphi 0, %s135
  $region4: #{tpu_custom_call.1} parent=0 // loop_header_branch
    %14 = sbr.rel (%p12) target = $region8
  $region5: #{tpu_custom_call.1} parent=0 // loop_body
    %s16 = ssub.s32 %s11, 1
    %s17 = ssub.s32 %s11, 2
    %s18 = sadd.s32 %s11, 1
    %s19 = ssub.s32 %s11, %s18
    %p20 = scmp.eq.s32.totalorder %s19, 0
    %s22 = sadd.s32 %s21, 1
    %s23 = scalar_select %p20, %s21, %s22
    %p26 = pneg %p20
    %p27 = scmp.eq.s32.totalorder %s11, 1
    %p28 = por %p26, %p27
    %p29 = scmp.ne.s32.totalorder %s21, %s24
    %p30 = scmp.eq.s32.totalorder %s11, 0
    %p31 = por %p29, %p30
    %p32 = scmp.ne.s32.totalorder %s21, %s24
    %p33 = scmp.eq.s32.totalorder %s16, 1
    %p34 = por %p32, %p33
    %p35 = scmp.ne.s32.totalorder %s24, %s25
    %p36 = scmp.eq.s32.totalorder %s16, 0
    %p37 = por %p35, %p36
    %p38 = scmp.ne.s32.totalorder %s24, %s25
    %p39 = scmp.eq.s32.totalorder %s17, 1
    %p40 = por %p38, %p39
    %p42 = scmp.ne.s32.totalorder %s25, %s41
    %p43 = scmp.eq.s32.totalorder %s17, 0
    %p44 = por %p42, %p43
    %s46 = sadd.s32 %s45, 1
    %p49 = scmp.eq.s32.totalorder %s11, 1
    %p50 = scmp.ne.s32.totalorder %s45, %s47
    %p51 = scmp.eq.s32.totalorder %s11, 0
    %p52 = por %p50, %p51
    %p53 = scmp.ne.s32.totalorder %s45, %s47
    %p54 = scmp.eq.s32.totalorder %s16, 1
    %p55 = por %p53, %p54
    %p56 = scmp.ne.s32.totalorder %s47, %s48
    %p57 = scmp.eq.s32.totalorder %s16, 0
    %p58 = por %p56, %p57
    %p59 = scmp.ne.s32.totalorder %s47, %s48
    %p60 = scmp.eq.s32.totalorder %s17, 1
    %p61 = por %p59, %p60
    %p63 = scmp.ne.s32.totalorder %s48, %s62
    %p64 = scmp.eq.s32.totalorder %s17, 0
    %p65 = por %p63, %p64
    %s67 = sadd.s32 %s66, 1
    %p70 = scmp.eq.s32.totalorder %s11, 1
    %p71 = scmp.ne.s32.totalorder %s66, %s68
    %p72 = scmp.eq.s32.totalorder %s11, 0
    %p73 = por %p71, %p72
    %p74 = scmp.ne.s32.totalorder %s66, %s68
    %p75 = scmp.eq.s32.totalorder %s16, 1
    %p76 = por %p74, %p75
    %p77 = scmp.ne.s32.totalorder %s68, %s69
    %p78 = scmp.eq.s32.totalorder %s16, 0
    %p79 = por %p77, %p78
    %p80 = scmp.ne.s32.totalorder %s68, %s69
    %p81 = scmp.eq.s32.totalorder %s17, 1
    %p82 = por %p80, %p81
    %p84 = scmp.ne.s32.totalorder %s69, %s83
    %p85 = scmp.eq.s32.totalorder %s17, 0
    %p86 = por %p84, %p85
    %s88 = sadd.s32 %s87, 1
    %p91 = scmp.eq.s32.totalorder %s11, 1
    %p92 = scmp.ne.s32.totalorder %s87, %s89
    %p93 = scmp.eq.s32.totalorder %s11, 0
    %p94 = por %p92, %p93
    %p95 = scmp.ne.s32.totalorder %s87, %s89
    %p96 = scmp.eq.s32.totalorder %s16, 1
    %p97 = por %p95, %p96
    %p98 = scmp.ne.s32.totalorder %s89, %s90
    %p99 = scmp.eq.s32.totalorder %s16, 0
    %p100 = por %p98, %p99
    %p101 = scmp.ne.s32.totalorder %s89, %s90
    %p102 = scmp.eq.s32.totalorder %s17, 1
    %p103 = por %p101, %p102
    %p105 = scmp.ne.s32.totalorder %s90, %s104
    %p106 = scmp.eq.s32.totalorder %s17, 0
    %p107 = por %p105, %p106
    %s109 = sadd.s32 %s108, 1
    %p112 = scmp.eq.s32.totalorder %s11, 1
    %p113 = scmp.ne.s32.totalorder %s108, %s110
    %p114 = scmp.eq.s32.totalorder %s11, 0
    %p115 = por %p113, %p114
    %p116 = scmp.ne.s32.totalorder %s108, %s110
    %p117 = scmp.eq.s32.totalorder %s16, 1
    %p118 = por %p116, %p117
    %p119 = scmp.ne.s32.totalorder %s110, %s111
    %p120 = scmp.eq.s32.totalorder %s16, 0
    %p121 = por %p119, %p120
    %p122 = scmp.ne.s32.totalorder %s110, %s111
    %p123 = scmp.eq.s32.totalorder %s17, 1
    %p124 = por %p122, %p123
    %p126 = scmp.ne.s32.totalorder %s111, %s125
    %p127 = scmp.eq.s32.totalorder %s17, 0
    %p128 = por %p126, %p127
    %s129 = ssub.s32 %s11, %s18
    %p130 = scmp.eq.s32.totalorder %s129, 0
    %s132 = sadd.s32 %s131, 1
    %s133 = scalar_select %p130, %s131, %s132
    %p136 = pneg %p130
    %p137 = scmp.eq.s32.totalorder %s11, 1
    %p138 = por %p136, %p137
    %p139 = scmp.ne.s32.totalorder %s131, %s134
    %p140 = scmp.eq.s32.totalorder %s11, 0
    %p141 = por %p139, %p140
    %p142 = scmp.ne.s32.totalorder %s131, %s134
    %p143 = scmp.eq.s32.totalorder %s16, 1
    %p144 = por %p142, %p143
    %p145 = scmp.ne.s32.totalorder %s134, %s135
    %p146 = scmp.eq.s32.totalorder %s16, 0
    %p147 = por %p145, %p146
    %p148 = scmp.ne.s32.totalorder %s134, %s135
    %p149 = scmp.eq.s32.totalorder %s17, 1
    %p150 = por %p148, %p149
    %p152 = scmp.ne.s32.totalorder %s135, %s151
    %p153 = scmp.eq.s32.totalorder %s17, 0
    %p154 = por %p152, %p153
    %p155 = scmp.le.s32.totalorder 1, %s11
    %p156 = scmp.lt.s32.totalorder %s11, 3
    %p157 = pnand %p155, %p156
    %p158 = pneg %p157
    // Predicated region
    $region9: #{tpu_custom_call.1} parent=5 // pred_check
      _
    $region10: #{tpu_custom_call.1} parent=5 // pred_check_branch
      %160 = sbr.rel (%p157) target = $region12
    $region11: #{tpu_custom_call.1} parent=5 // pred_region
      %s161 = ssub.s32 %s11, 1
      // Predicated region
      $region13: #{tpu_custom_call.1} parent=11 // pred_check
        %p162 = pneg %p58
      $region14: #{tpu_custom_call.1} parent=11 // pred_check_branch
        %164 = sbr.rel (%p162) target = $region16
      $region15: #{tpu_custom_call.1} parent=11 // pred_region
        _
      $region16: #{tpu_custom_call.1} parent=11 // pred_fallthru
        _
      // Predicated region
      $region17: #{tpu_custom_call.1} parent=11 // pred_check
        %p165 = pneg %p79
      $region18: #{tpu_custom_call.1} parent=11 // pred_check_branch
        %167 = sbr.rel (%p165) target = $region20
      $region19: #{tpu_custom_call.1} parent=11 // pred_region
        _
      $region20: #{tpu_custom_call.1} parent=11 // pred_fallthru
        _
      // Predicated region
      $region21: #{tpu_custom_call.1} parent=11 // pred_check
        %p168 = pneg %p100
      $region22: #{tpu_custom_call.1} parent=11 // pred_check_branch
        %170 = sbr.rel (%p168) target = $region24
      $region23: #{tpu_custom_call.1} parent=11 // pred_region
        _
      $region24: #{tpu_custom_call.1} parent=11 // pred_fallthru
        _
      // Predicated region
      $region25: #{tpu_custom_call.1} parent=11 // pred_check
        %p171 = pneg %p121
      $region26: #{tpu_custom_call.1} parent=11 // pred_check_branch
        %173 = sbr.rel (%p171) target = $region28
      $region27: #{tpu_custom_call.1} parent=11 // pred_region
        _
      $region28: #{tpu_custom_call.1} parent=11 // pred_fallthru
        _
    $region12: #{tpu_custom_call.1} parent=5 // pred_fallthru
      _
    %p174 = scmp.lt.s32.totalorder %s11, 2
    // Predicated region
    $region29: #{tpu_custom_call.1} parent=5 // pred_check
      %p175 = pneg %p174
    $region30: #{tpu_custom_call.1} parent=5 // pred_check_branch
      %177 = sbr.rel (%p175) target = $region32
    $region31: #{tpu_custom_call.1} parent=5 // pred_region
      // Predicated region
      $region33: #{tpu_custom_call.1} parent=31 // pred_check
        %p178 = pneg %p31
      $region34: #{tpu_custom_call.1} parent=31 // pred_check_branch
        %180 = sbr.rel (%p178) target = $region36
      $region35: #{tpu_custom_call.1} parent=31 // pred_region
        %p181 = scmp.lt.s32.totalorder %s11, 1
        %s182 = scalar_select %p181, %s11, 1
        %s183 = smul.addr %s182, 8
        %s184 = scalar_lea.vmem %s0, %s183
      $region36: #{tpu_custom_call.1} parent=31 // pred_fallthru
        _
    $region32: #{tpu_custom_call.1} parent=5 // pred_fallthru
      _
    %p185 = scmp.le.s32.totalorder 1, %s11
    %p186 = scmp.lt.s32.totalorder %s11, 3
    %p187 = pnand %p185, %p186
    %p188 = pneg %p187
    // Predicated region
    $region37: #{tpu_custom_call.1} parent=5 // pred_check
      _
    $region38: #{tpu_custom_call.1} parent=5 // pred_check_branch
      %190 = sbr.rel (%p187) target = $region40
    $region39: #{tpu_custom_call.1} parent=5 // pred_region
      %s191 = ssub.s32 %s11, 1
      %p192 = scmp.lt.s32.totalorder %s16, 1
      %s193 = scalar_select %p192, %s16, 1
      %s194 = smul.addr %s193, 8
      %s195 = scalar_lea.vmem %s0, %s194
      %p196 = pneg %p37
      %p197 = pneg %p34
      %p198 = pneg %p58
      %p199 = pneg %p55
      %p200 = pneg %p79
      %p201 = pneg %p76
      %p202 = pneg %p100
      %p203 = pneg %p97
      %p204 = pneg %p121
      %p205 = pneg %p118
      %p206 = pneg %p147
      %p207 = pneg %p144
      %p208 = scmp.lt.s32.totalorder %s16, 1
      %s209 = scalar_select %p208, %s16, 1
      %s210 = smul.addr %s209, 2
      %s211 = smul.addr %s210, 8
      %s212 = scalar_lea.vmem %s5, %s211
      %p213 = scmp.lt.s32.totalorder %s16, 1
      %s214 = scalar_select %p213, %s16, 1
      %s215 = smul.addr %s214, 8
      %s216 = scalar_lea.vmem %s0, %s215
      %p217 = scmp.lt.s32.totalorder %s16, 1
      %s218 = scalar_select %p217, %s16, 1
      %s219 = smul.addr %s218, 2
      %s220 = smul.addr %s219, 8
      %s221 = scalar_lea.vmem %s5, %s220
      %v222 = vld [vmem:[%s216] sm:$0xff]
      %v223 = vld [vmem:[%s1] sm:$0xff]
      %v224 = vld [vmem:[%s1 + $0x8] sm:$0xff]
      %v225 = vld [vmem:[%s1 + $0x10] sm:$0xff]
      %v226 = vld [vmem:[%s1 + $0x18] sm:$0xff]
      %v227 = vld [vmem:[%s1 + $0x20] sm:$0xff]
      %v228 = vld [vmem:[%s1 + $0x28] sm:$0xff]
      %v229 = vld [vmem:[%s2] sm:$0x1]
      %v231 = vperm.slane %v229, 0
      %vm233 = vcmask 392192
      %v235 = vsel %vm233, %v222, 0
      %237 = vmatpush.msra.mxu0 0.0
      %238 = vmatpush.msra.mxu0 0.0
      %239 = vmatpush.msra.mxu0 0.0
      %240 = vmatpush.msra.mxu0 0.0
      %241 = vmatpush.msra.mxu0 0.0
      %242 = vmatpush.msra.mxu0 0.0
      %243 = vmatpush.msra.mxu0 0.0
      %244 = vmatpush.msra.mxu0 0.0
      %245 = vmatpush.msra.mxu0 0.0
      %246 = vmatpush.msra.mxu0 0.0
      %247 = vmatpush.msra.mxu0 %v228
      %248 = vmatpush.msra.mxu0 %v227
      %249 = vmatpush.msra.mxu0 %v226
      %250 = vmatpush.msra.mxu0 %v225
      %251 = vmatpush.msra.mxu0 %v224
      %252 = vmatpush.msra.mxu0 %v223
      %253 = vmatmul.f32.gmra.mxu0 %v235
      %v254 = vpop.f32.mrf.mxu0
      %v255 = vadd.f32 %v231, %v254
      %256 = vdwg.mxu0
      %v257 = vld [vmem:[%s3] sm:$0x1]
      %v258 = vld [vmem:[%s4] sm:$0x1]
      %v259 = vadd.f32 %v257, %v258
      %vm260 = vcmask 253952
      %261 = vst.msk [vmem:[%s221] sm:$0x1] %vm260, %v259
      %v262 = vld [vmem:[%s4 + $0x1] sm:$0xff]
      %v263 = vadd.f32 %v255, %v262
      %vm264 = vcmask 261120
      %265 = vst.msk [vmem:[%s221 + $0x1] sm:$0xff] %vm264, %v263
      %p266 = scmp.lt.s32.totalorder %s16, 1
      %s267 = scalar_select %p266, %s16, 1
      %s268 = smul.addr %s267, 2
      %s269 = smul.addr %s268, 8
      %s270 = scalar_lea.vmem %s5, %s269
      // Predicated region
      $region41: #{tpu_custom_call.1} parent=39 // pred_check
        %p271 = pneg %p144
      $region42: #{tpu_custom_call.1} parent=39 // pred_check_branch
        %273 = sbr.rel (%p271) target = $region44
      $region43: #{tpu_custom_call.1} parent=39 // pred_region
        _
      $region44: #{tpu_custom_call.1} parent=39 // pred_fallthru
        _
    $region40: #{tpu_custom_call.1} parent=5 // pred_fallthru
      _
    %p274 = scmp.le.s32.totalorder 2, %s11
    // Predicated region
    $region45: #{tpu_custom_call.1} parent=5 // pred_check
      %p275 = pneg %p274
    $region46: #{tpu_custom_call.1} parent=5 // pred_check_branch
      %277 = sbr.rel (%p275) target = $region48
    $region47: #{tpu_custom_call.1} parent=5 // pred_region
      %s278 = ssub.s32 %s11, 2
      // Predicated region
      $region49: #{tpu_custom_call.1} parent=47 // pred_check
        %p279 = pneg %p150
      $region50: #{tpu_custom_call.1} parent=47 // pred_check_branch
        %281 = sbr.rel (%p279) target = $region52
      $region51: #{tpu_custom_call.1} parent=47 // pred_region
        %p282 = scmp.lt.s32.totalorder %s17, 1
        %s283 = scalar_select %p282, %s17, 1
        %s284 = smul.addr %s283, 2
        %s285 = smul.addr %s284, 8
        %s286 = scalar_lea.vmem %s5, %s285
      $region52: #{tpu_custom_call.1} parent=47 // pred_fallthru
        _
    $region48: #{tpu_custom_call.1} parent=5 // pred_fallthru
      _
  $region6: #{tpu_custom_call.1} parent=0 // loop_footer
    %s15 = sadd.s32 1, %s11
  $region7: #{tpu_custom_call.1} parent=0 // loop_footer_branch
    %10 = sbr.rel target = $region3
  $region8: #{tpu_custom_call.1} parent=0 // loop_exit
    _

</llo_original>
